<compile_context>
chip_gen: v5e
topology: v5e:2x2
jax: 0.10.0
libtpu: 0.0.40
codegen_flags: <defaults>
</compile_context>

<pallas_src>
import functools

import jax
import jax.numpy as jnp
from jax import lax
from jax.experimental import pallas as pl
from jax.experimental.pallas import tpu as pltpu


def _encoder_lstm_kernel(n_layers, T, B, H, x_ref, *args):
    """Fused multi-layer LSTM.  Single kernel invocation (no grid).

    Ref layout (all VMEM):
      x_ref                         (T*B, E)  bf16  embedded inputs, time-major rows
      per layer l: wih_l (in,4H) bf16, whh_l (H,4H) bf16, b_l (1,4H) f32
      h_out_ref, c_out_ref          (L, B, H) f32   final states per layer
      xg_ref                        (T*B,4H)  f32   hoisted x-projection + bias
      seq_a, seq_b                  (T*B, H)  f32   inter-layer sequence (ping/pong)
      h_sc, c_sc                    (B, H)    f32   recurrent state
    """
    w_refs = args[:3 * n_layers]
    h_out_ref = args[3 * n_layers]
    c_out_ref = args[3 * n_layers + 1]
    xg_ref, seq_a, seq_b, h_sc, c_sc = args[3 * n_layers + 2:]
    seq_bufs = (seq_a, seq_b)

    for layer in range(n_layers):
        wih_ref = w_refs[3 * layer]        # (in_dim, 4H) bf16
        whh_ref = w_refs[3 * layer + 1]    # (H, 4H)      bf16
        b_ref = w_refs[3 * layer + 2]      # (1, 4H)      f32

        if layer == 0:
            x_in = x_ref[...]                                   # (T*B, E) bf16
        else:
            x_in = seq_bufs[(layer - 1) % 2][...].astype(jnp.bfloat16)

        # ---- Phase 1: input projection for ALL timesteps in one MXU matmul,
        # bias folded in here (off the serial critical path).
        xg_ref[...] = (
            jnp.dot(x_in, wih_ref[...], preferred_element_type=jnp.float32)
            + b_ref[...])

        # ---- Phase 2: sequential recurrence (only h_prev @ W_hh per step).
        h_sc[...] = jnp.zeros_like(h_sc)
        c_sc[...] = jnp.zeros_like(c_sc)

        seq_out = seq_bufs[layer % 2]
        write_seq = layer < n_layers - 1   # last layer's output sequence is unused

        def step(t, carry):
            row = t * B
            if B % 8 == 0:
                row = pl.multiple_of(row, 8)       # aligned sublane block
            h_prev = h_sc[...]                     # (B, H) f32
            c_prev = c_sc[...]
            gates = xg_ref[pl.ds(row, B), :] + jnp.dot(
                h_prev.astype(jnp.bfloat16), whh_ref[...],
                preferred_element_type=jnp.float32)              # (B, 4H) f32
            i_g = jax.nn.sigmoid(gates[:, 0 * H:1 * H])
            f_g = jax.nn.sigmoid(gates[:, 1 * H:2 * H])
            g_g = jnp.tanh(gates[:, 2 * H:3 * H])
            o_g = jax.nn.sigmoid(gates[:, 3 * H:4 * H])
            c_new = f_g * c_prev + i_g * g_g
            h_new = o_g * jnp.tanh(c_new)
            h_sc[...] = h_new
            c_sc[...] = c_new
            if write_seq:
                seq_out[pl.ds(row, B), :] = h_new
            return carry

        lax.fori_loop(0, T, step, 0)

        h_out_ref[layer] = h_sc[...].astype(h_out_ref.dtype)
        c_out_ref[layer] = c_sc[...].astype(c_out_ref.dtype)


def encoder_lstm_pallas(x_flat, layer_weights, *, T, B, H):
    """x_flat: (T*B, E) bf16.  layer_weights: list of (wih_t, whh_t, bias).

    Returns (hidden, cell), each (n_layers, B, H) float32."""
    n_layers = len(layer_weights)
    inputs = [x_flat]
    for wih_t, whh_t, bias in layer_weights:
        inputs += [wih_t, whh_t, bias]

    vmem = pl.BlockSpec(memory_space=pltpu.MemorySpace.VMEM)
    out_shapes = (jax.ShapeDtypeStruct((n_layers, B, H), jnp.float32),
                  jax.ShapeDtypeStruct((n_layers, B, H), jnp.float32))

    kernel = functools.partial(_encoder_lstm_kernel, n_layers, T, B, H)
    return pl.pallas_call(
        kernel,
        out_shape=out_shapes,
        in_specs=[vmem] * len(inputs),
        out_specs=(vmem, vmem),
        scratch_shapes=[
            pltpu.VMEM((T * B, 4 * H), jnp.float32),   # hoisted gates (x-projection)
            pltpu.VMEM((T * B, H), jnp.float32),       # inter-layer seq (ping)
            pltpu.VMEM((T * B, H), jnp.float32),       # inter-layer seq (pong)
            pltpu.VMEM((B, H), jnp.float32),           # h state
            pltpu.VMEM((B, H), jnp.float32),           # c state
        ],
    )(*inputs)


def init_encoder_params(key, vocab_size, emb_dim, hid_dim, n_layers):
    """Deterministic synthetic parameters matching the module's shapes."""
    keys = jax.random.split(key, 1 + 4 * n_layers)
    params = {
        "embedding": jax.random.normal(keys[0], (vocab_size, emb_dim),
                                       jnp.float32) * 0.02,
        "layers": [],
    }
    k = 1.0 / jnp.sqrt(hid_dim)
    for layer in range(n_layers):
        in_dim = emb_dim if layer == 0 else hid_dim
        kw = keys[1 + 4 * layer: 1 + 4 * (layer + 1)]
        params["layers"].append({
            "w_ih": jax.random.uniform(kw[0], (4 * hid_dim, in_dim),
                                       jnp.float32, -k, k),
            "w_hh": jax.random.uniform(kw[1], (4 * hid_dim, hid_dim),
                                       jnp.float32, -k, k),
            "b_ih": jax.random.uniform(kw[2], (4 * hid_dim,),
                                       jnp.float32, -k, k),
            "b_hh": jax.random.uniform(kw[3], (4 * hid_dim,),
                                       jnp.float32, -k, k),
        })
    return params


@jax.jit
def encoder_forward(params, src):
    """src: (T, B) int32 token ids -> (hidden, cell), each (n_layers, B, H)."""
    T, B = src.shape
    E = params["embedding"].shape[1]
    H = params["layers"][0]["w_hh"].shape[1]

    embedded = jnp.take(params["embedding"], src, axis=0)     # (T, B, E) — glue gather

    # Pad batch to a multiple of 8 so each timestep's row block is a full,
    # aligned sublane tile inside the kernel (padded rows are sliced off).
    B_pad = ((B + 7) // 8) * 8
    if B_pad != B:
        embedded = jnp.pad(embedded, ((0, 0), (0, B_pad - B), (0, 0)))
    x_flat = embedded.reshape(T * B_pad, E).astype(jnp.bfloat16)

    layer_weights = []
    for p in params["layers"]:
        wih_t = p["w_ih"].T.astype(jnp.bfloat16)              # (in_dim, 4H)
        whh_t = p["w_hh"].T.astype(jnp.bfloat16)              # (H, 4H)
        bias = (p["b_ih"] + p["b_hh"]).astype(jnp.float32).reshape(1, 4 * H)
        layer_weights.append((wih_t, whh_t, bias))

    hidden, cell = encoder_lstm_pallas(x_flat, layer_weights, T=T, B=B_pad, H=H)
    return hidden[:, :B, :], cell[:, :B, :]


def _encoder_reference(params, src):
    """Pure-JAX f32 reference (PyTorch nn.LSTM semantics) for a sanity check."""
    x = jnp.take(params["embedding"], src, axis=0)            # (T, B, E)
    hs, cs = [], []
    for p in params["layers"]:
        T, B, _ = x.shape
        H = p["w_hh"].shape[1]
        wih, whh = p["w_ih"].T, p["w_hh"].T
        b = p["b_ih"] + p["b_hh"]
        h = jnp.zeros((B, H), jnp.float32)
        c = jnp.zeros((B, H), jnp.float32)
        outs = []
        for t in range(T):
            g = x[t] @ wih + h @ whh + b
            i = jax.nn.sigmoid(g[:, 0 * H:1 * H])
            f = jax.nn.sigmoid(g[:, 1 * H:2 * H])
            gg = jnp.tanh(g[:, 2 * H:3 * H])
            o = jax.nn.sigmoid(g[:, 3 * H:4 * H])
            c = f * c + i * gg
            h = o * jnp.tanh(c)
            outs.append(h)
        x = jnp.stack(outs, axis=0)
        hs.append(h)
        cs.append(c)
    return jnp.stack(hs, axis=0), jnp.stack(cs, axis=0)


if __name__ == "__main__":
    VOCAB = 64
    EMB_DIM = 32
    HID_DIM = 32
    N_LAYERS = 2
    SEQ = 8
    BATCH = 2

    key = jax.random.PRNGKey(0)
    pkey, skey = jax.random.split(key)
    params = init_encoder_params(pkey, VOCAB, EMB_DIM, HID_DIM, N_LAYERS)
    src = jax.random.randint(skey, (SEQ, BATCH), 0, VOCAB, dtype=jnp.int32)

    hidden, cell = encoder_forward(params, src)
    jax.block_until_ready((hidden, cell))

    assert hidden.shape == (N_LAYERS, BATCH, HID_DIM)
    assert cell.shape == (N_LAYERS, BATCH, HID_DIM)

    ref_h, ref_c = _encoder_reference(params, src)
    err = max(float(jnp.max(jnp.abs(hidden - ref_h))),
              float(jnp.max(jnp.abs(cell - ref_c))))
    assert err < 5e-2, f"numerical mismatch vs f32 reference: {err}"

    print("KERNEL_OK")
</pallas_src>

<mosaic_0001>
module attributes {stable_mosaic.version = 11 : i64} {
  func.func @_encoder_lstm_kernel(%arg0: memref<64x32xbf16, #tpu.memory_space<vmem>>, %arg1: memref<32x128xbf16, #tpu.memory_space<vmem>>, %arg2: memref<32x128xbf16, #tpu.memory_space<vmem>>, %arg3: memref<1x128xf32, #tpu.memory_space<vmem>>, %arg4: memref<32x128xbf16, #tpu.memory_space<vmem>>, %arg5: memref<32x128xbf16, #tpu.memory_space<vmem>>, %arg6: memref<1x128xf32, #tpu.memory_space<vmem>>, %arg7: memref<2x8x32xf32, #tpu.memory_space<vmem>>, %arg8: memref<2x8x32xf32, #tpu.memory_space<vmem>>, %arg9: memref<64x128xf32, #tpu.memory_space<vmem>>, %arg10: memref<64x32xf32, #tpu.memory_space<vmem>>, %arg11: memref<64x32xf32, #tpu.memory_space<vmem>>, %arg12: memref<8x32xf32, #tpu.memory_space<vmem>>, %arg13: memref<8x32xf32, #tpu.memory_space<vmem>>) attributes {dimension_semantics = [], scalar_prefetch = 0 : i64, scratch_operands = 5 : i64, tpu.core_type = #tpu.core_type<tc>} {
    %c0 = arith.constant 0 : index
    %c0_0 = arith.constant 0 : index
    %0 = vector.load %arg0[%c0, %c0_0] : memref<64x32xbf16, #tpu.memory_space<vmem>>, vector<64x32xbf16>
    %c0_1 = arith.constant 0 : index
    %c0_2 = arith.constant 0 : index
    %1 = vector.load %arg1[%c0_1, %c0_2] : memref<32x128xbf16, #tpu.memory_space<vmem>>, vector<32x128xbf16>
    %cst = arith.constant dense<0.000000e+00> : vector<64x128xf32>
    %2 = tpu.matmul %0, %1, %cst {dimension_numbers = #tpu.dot_dimension_numbers<[1], [0], [0], [1], [0, 0, 1, 1], [], []>} : vector<64x32xbf16>, vector<32x128xbf16>, vector<64x128xf32> -> vector<64x128xf32>
    %c0_3 = arith.constant 0 : index
    %c0_4 = arith.constant 0 : index
    %3 = vector.load %arg3[%c0_3, %c0_4] : memref<1x128xf32, #tpu.memory_space<vmem>>, vector<1x128xf32>
    %4 = vector.broadcast %3 : vector<1x128xf32> to vector<64x128xf32>
    %5 = arith.addf %2, %4 : vector<64x128xf32>
    %c0_5 = arith.constant 0 : index
    %c0_6 = arith.constant 0 : index
    %6 = vector.load %arg9[%c0_5, %c0_6] : memref<64x128xf32, #tpu.memory_space<vmem>>, vector<64x128xf32>
    tpu.vector_store %arg9[%c0_5, %c0_6], %5 {strides = array<i32>} : memref<64x128xf32, #tpu.memory_space<vmem>>, vector<64x128xf32>,
    %cst_7 = arith.constant 0.000000e+00 : f32
    %7 = vector.broadcast %cst_7 : f32 to vector<8x32xf32>
    %c0_8 = arith.constant 0 : index
    %c0_9 = arith.constant 0 : index
    %8 = vector.load %arg12[%c0_8, %c0_9] : memref<8x32xf32, #tpu.memory_space<vmem>>, vector<8x32xf32>
    tpu.vector_store %arg12[%c0_8, %c0_9], %7 {strides = array<i32>} : memref<8x32xf32, #tpu.memory_space<vmem>>, vector<8x32xf32>,
    %cst_10 = arith.constant 0.000000e+00 : f32
    %9 = vector.broadcast %cst_10 : f32 to vector<8x32xf32>
    %c0_11 = arith.constant 0 : index
    %c0_12 = arith.constant 0 : index
    %10 = vector.load %arg13[%c0_11, %c0_12] : memref<8x32xf32, #tpu.memory_space<vmem>>, vector<8x32xf32>
    tpu.vector_store %arg13[%c0_11, %c0_12], %9 {strides = array<i32>} : memref<8x32xf32, #tpu.memory_space<vmem>>, vector<8x32xf32>,
    %c0_i32 = arith.constant 0 : i32
    %c8_i32 = arith.constant 8 : i32
    %11 = arith.addi %c0_i32, %c8_i32 : i32
    %c1_i32 = arith.constant 1 : i32
    scf.for %arg14 = %c0_i32 to %11 step %c1_i32  : i32 {
      %c8_i32_52 = arith.constant 8 : i32
      %41 = arith.muli %arg14, %c8_i32_52 : i32
      %42 = tpu.assume_multiple %41, 8 : i32
      %c0_53 = arith.constant 0 : index
      %c0_54 = arith.constant 0 : index
      %43 = vector.load %arg12[%c0_53, %c0_54] : memref<8x32xf32, #tpu.memory_space<vmem>>, vector<8x32xf32>
      %c0_55 = arith.constant 0 : index
      %c0_56 = arith.constant 0 : index
      %44 = vector.load %arg13[%c0_55, %c0_56] : memref<8x32xf32, #tpu.memory_space<vmem>>, vector<8x32xf32>
      %45 = arith.index_cast %42 : i32 to index
      %c0_57 = arith.constant 0 : index
      %46 = vector.load %arg9[%45, %c0_57] : memref<64x128xf32, #tpu.memory_space<vmem>>, vector<8x128xf32>
      %47 = arith.truncf %43 : vector<8x32xf32> to vector<8x32xbf16>
      %c0_58 = arith.constant 0 : index
      %c0_59 = arith.constant 0 : index
      %48 = vector.load %arg2[%c0_58, %c0_59] : memref<32x128xbf16, #tpu.memory_space<vmem>>, vector<32x128xbf16>
      %cst_60 = arith.constant dense<0.000000e+00> : vector<8x128xf32>
      %49 = tpu.matmul %47, %48, %cst_60 {dimension_numbers = #tpu.dot_dimension_numbers<[1], [0], [0], [1], [0, 0, 1, 1], [], []>} : vector<8x32xbf16>, vector<32x128xbf16>, vector<8x128xf32> -> vector<8x128xf32>
      %50 = arith.addf %46, %49 : vector<8x128xf32>
      %51 = vector.extract_strided_slice %50 {offsets = [0, 0], sizes = [8, 32], strides = [1, 1]} : vector<8x128xf32> to vector<8x32xf32>
      %52 = arith.negf %51 : vector<8x32xf32>
      %53 = math.exp %52 : vector<8x32xf32>
      %cst_61 = arith.constant 1.000000e+00 : f32
      %54 = vector.broadcast %cst_61 : f32 to vector<8x32xf32>
      %55 = arith.addf %54, %53 : vector<8x32xf32>
      %56 = arith.divf %54, %55 : vector<8x32xf32>
      %57 = vector.extract_strided_slice %50 {offsets = [0, 32], sizes = [8, 32], strides = [1, 1]} : vector<8x128xf32> to vector<8x32xf32>
      %58 = arith.negf %57 : vector<8x32xf32>
      %59 = math.exp %58 : vector<8x32xf32>
      %cst_62 = arith.constant 1.000000e+00 : f32
      %60 = vector.broadcast %cst_62 : f32 to vector<8x32xf32>
      %61 = arith.addf %60, %59 : vector<8x32xf32>
      %62 = arith.divf %60, %61 : vector<8x32xf32>
      %63 = vector.extract_strided_slice %50 {offsets = [0, 64], sizes = [8, 32], strides = [1, 1]} : vector<8x128xf32> to vector<8x32xf32>
      %64 = math.tanh %63 : vector<8x32xf32>
      %65 = vector.extract_strided_slice %50 {offsets = [0, 96], sizes = [8, 32], strides = [1, 1]} : vector<8x128xf32> to vector<8x32xf32>
      %66 = arith.negf %65 : vector<8x32xf32>
      %67 = math.exp %66 : vector<8x32xf32>
      %cst_63 = arith.constant 1.000000e+00 : f32
      %68 = vector.broadcast %cst_63 : f32 to vector<8x32xf32>
      %69 = arith.addf %68, %67 : vector<8x32xf32>
      %70 = arith.divf %68, %69 : vector<8x32xf32>
      %71 = arith.mulf %62, %44 : vector<8x32xf32>
      %72 = arith.mulf %56, %64 : vector<8x32xf32>
      %73 = arith.addf %71, %72 : vector<8x32xf32>
      %74 = math.tanh %73 : vector<8x32xf32>
      %75 = arith.mulf %70, %74 : vector<8x32xf32>
      %c0_64 = arith.constant 0 : index
      %c0_65 = arith.constant 0 : index
      %76 = vector.load %arg12[%c0_64, %c0_65] : memref<8x32xf32, #tpu.memory_space<vmem>>, vector<8x32xf32>
      tpu.vector_store %arg12[%c0_64, %c0_65], %75 {strides = array<i32>} : memref<8x32xf32, #tpu.memory_space<vmem>>, vector<8x32xf32>,
      %c0_66 = arith.constant 0 : index
      %c0_67 = arith.constant 0 : index
      %77 = vector.load %arg13[%c0_66, %c0_67] : memref<8x32xf32, #tpu.memory_space<vmem>>, vector<8x32xf32>
      tpu.vector_store %arg13[%c0_66, %c0_67], %73 {strides = array<i32>} : memref<8x32xf32, #tpu.memory_space<vmem>>, vector<8x32xf32>,
      %78 = arith.index_cast %42 : i32 to index
      %c0_68 = arith.constant 0 : index
      %79 = vector.load %arg10[%78, %c0_68] : memref<64x32xf32, #tpu.memory_space<vmem>>, vector<8x32xf32>
      tpu.vector_store %arg10[%78, %c0_68], %75 {strides = array<i32>} : memref<64x32xf32, #tpu.memory_space<vmem>>, vector<8x32xf32>,
    }
    %c8_i32_13 = arith.constant 8 : i32
    %c0_14 = arith.constant 0 : index
    %c0_15 = arith.constant 0 : index
    %12 = vector.load %arg12[%c0_14, %c0_15] : memref<8x32xf32, #tpu.memory_space<vmem>>, vector<8x32xf32>
    %c0_16 = arith.constant 0 : index
    %c0_17 = arith.constant 0 : index
    %c0_18 = arith.constant 0 : index
    %13 = vector.load %arg7[%c0_16, %c0_17, %c0_18] : memref<2x8x32xf32, #tpu.memory_space<vmem>>, vector<1x8x32xf32>
    %14 = vector.shape_cast %13 : vector<1x8x32xf32> to vector<8x32xf32>
    %15 = vector.shape_cast %12 : vector<8x32xf32> to vector<1x8x32xf32>
    tpu.vector_store %arg7[%c0_16, %c0_17, %c0_18], %15 {strides = array<i32>} : memref<2x8x32xf32, #tpu.memory_space<vmem>>, vector<1x8x32xf32>,
    %c0_19 = arith.constant 0 : index
    %c0_20 = arith.constant 0 : index
    %16 = vector.load %arg13[%c0_19, %c0_20] : memref<8x32xf32, #tpu.memory_space<vmem>>, vector<8x32xf32>
    %c0_21 = arith.constant 0 : index
    %c0_22 = arith.constant 0 : index
    %c0_23 = arith.constant 0 : index
    %17 = vector.load %arg8[%c0_21, %c0_22, %c0_23] : memref<2x8x32xf32, #tpu.memory_space<vmem>>, vector<1x8x32xf32>
    %18 = vector.shape_cast %17 : vector<1x8x32xf32> to vector<8x32xf32>
    %19 = vector.shape_cast %16 : vector<8x32xf32> to vector<1x8x32xf32>
    tpu.vector_store %arg8[%c0_21, %c0_22, %c0_23], %19 {strides = array<i32>} : memref<2x8x32xf32, #tpu.memory_space<vmem>>, vector<1x8x32xf32>,
    %c0_24 = arith.constant 0 : index
    %c0_25 = arith.constant 0 : index
    %20 = vector.load %arg10[%c0_24, %c0_25] : memref<64x32xf32, #tpu.memory_space<vmem>>, vector<64x32xf32>
    %21 = arith.truncf %20 : vector<64x32xf32> to vector<64x32xbf16>
    %c0_26 = arith.constant 0 : index
    %c0_27 = arith.constant 0 : index
    %22 = vector.load %arg4[%c0_26, %c0_27] : memref<32x128xbf16, #tpu.memory_space<vmem>>, vector<32x128xbf16>
    %cst_28 = arith.constant dense<0.000000e+00> : vector<64x128xf32>
    %23 = tpu.matmul %21, %22, %cst_28 {dimension_numbers = #tpu.dot_dimension_numbers<[1], [0], [0], [1], [0, 0, 1, 1], [], []>} : vector<64x32xbf16>, vector<32x128xbf16>, vector<64x128xf32> -> vector<64x128xf32>
    %c0_29 = arith.constant 0 : index
    %c0_30 = arith.constant 0 : index
    %24 = vector.load %arg6[%c0_29, %c0_30] : memref<1x128xf32, #tpu.memory_space<vmem>>, vector<1x128xf32>
    %25 = vector.broadcast %24 : vector<1x128xf32> to vector<64x128xf32>
    %26 = arith.addf %23, %25 : vector<64x128xf32>
    %c0_31 = arith.constant 0 : index
    %c0_32 = arith.constant 0 : index
    %27 = vector.load %arg9[%c0_31, %c0_32] : memref<64x128xf32, #tpu.memory_space<vmem>>, vector<64x128xf32>
    tpu.vector_store %arg9[%c0_31, %c0_32], %26 {strides = array<i32>} : memref<64x128xf32, #tpu.memory_space<vmem>>, vector<64x128xf32>,
    %cst_33 = arith.constant 0.000000e+00 : f32
    %28 = vector.broadcast %cst_33 : f32 to vector<8x32xf32>
    %c0_34 = arith.constant 0 : index
    %c0_35 = arith.constant 0 : index
    %29 = vector.load %arg12[%c0_34, %c0_35] : memref<8x32xf32, #tpu.memory_space<vmem>>, vector<8x32xf32>
    tpu.vector_store %arg12[%c0_34, %c0_35], %28 {strides = array<i32>} : memref<8x32xf32, #tpu.memory_space<vmem>>, vector<8x32xf32>,
    %cst_36 = arith.constant 0.000000e+00 : f32
    %30 = vector.broadcast %cst_36 : f32 to vector<8x32xf32>
    %c0_37 = arith.constant 0 : index
    %c0_38 = arith.constant 0 : index
    %31 = vector.load %arg13[%c0_37, %c0_38] : memref<8x32xf32, #tpu.memory_space<vmem>>, vector<8x32xf32>
    tpu.vector_store %arg13[%c0_37, %c0_38], %30 {strides = array<i32>} : memref<8x32xf32, #tpu.memory_space<vmem>>, vector<8x32xf32>,
    %c0_i32_39 = arith.constant 0 : i32
    %c8_i32_40 = arith.constant 8 : i32
    %32 = arith.addi %c0_i32_39, %c8_i32_40 : i32
    %c1_i32_41 = arith.constant 1 : i32
    scf.for %arg14 = %c0_i32_39 to %32 step %c1_i32_41  : i32 {
      %c8_i32_52 = arith.constant 8 : i32
      %41 = arith.muli %arg14, %c8_i32_52 : i32
      %42 = tpu.assume_multiple %41, 8 : i32
      %c0_53 = arith.constant 0 : index
      %c0_54 = arith.constant 0 : index
      %43 = vector.load %arg12[%c0_53, %c0_54] : memref<8x32xf32, #tpu.memory_space<vmem>>, vector<8x32xf32>
      %c0_55 = arith.constant 0 : index
      %c0_56 = arith.constant 0 : index
      %44 = vector.load %arg13[%c0_55, %c0_56] : memref<8x32xf32, #tpu.memory_space<vmem>>, vector<8x32xf32>
      %45 = arith.index_cast %42 : i32 to index
      %c0_57 = arith.constant 0 : index
      %46 = vector.load %arg9[%45, %c0_57] : memref<64x128xf32, #tpu.memory_space<vmem>>, vector<8x128xf32>
      %47 = arith.truncf %43 : vector<8x32xf32> to vector<8x32xbf16>
      %c0_58 = arith.constant 0 : index
      %c0_59 = arith.constant 0 : index
      %48 = vector.load %arg5[%c0_58, %c0_59] : memref<32x128xbf16, #tpu.memory_space<vmem>>, vector<32x128xbf16>
      %cst_60 = arith.constant dense<0.000000e+00> : vector<8x128xf32>
      %49 = tpu.matmul %47, %48, %cst_60 {dimension_numbers = #tpu.dot_dimension_numbers<[1], [0], [0], [1], [0, 0, 1, 1], [], []>} : vector<8x32xbf16>, vector<32x128xbf16>, vector<8x128xf32> -> vector<8x128xf32>
      %50 = arith.addf %46, %49 : vector<8x128xf32>
      %51 = vector.extract_strided_slice %50 {offsets = [0, 0], sizes = [8, 32], strides = [1, 1]} : vector<8x128xf32> to vector<8x32xf32>
      %52 = arith.negf %51 : vector<8x32xf32>
      %53 = math.exp %52 : vector<8x32xf32>
      %cst_61 = arith.constant 1.000000e+00 : f32
      %54 = vector.broadcast %cst_61 : f32 to vector<8x32xf32>
      %55 = arith.addf %54, %53 : vector<8x32xf32>
      %56 = arith.divf %54, %55 : vector<8x32xf32>
      %57 = vector.extract_strided_slice %50 {offsets = [0, 32], sizes = [8, 32], strides = [1, 1]} : vector<8x128xf32> to vector<8x32xf32>
      %58 = arith.negf %57 : vector<8x32xf32>
      %59 = math.exp %58 : vector<8x32xf32>
      %cst_62 = arith.constant 1.000000e+00 : f32
      %60 = vector.broadcast %cst_62 : f32 to vector<8x32xf32>
      %61 = arith.addf %60, %59 : vector<8x32xf32>
      %62 = arith.divf %60, %61 : vector<8x32xf32>
      %63 = vector.extract_strided_slice %50 {offsets = [0, 64], sizes = [8, 32], strides = [1, 1]} : vector<8x128xf32> to vector<8x32xf32>
      %64 = math.tanh %63 : vector<8x32xf32>
      %65 = vector.extract_strided_slice %50 {offsets = [0, 96], sizes = [8, 32], strides = [1, 1]} : vector<8x128xf32> to vector<8x32xf32>
      %66 = arith.negf %65 : vector<8x32xf32>
      %67 = math.exp %66 : vector<8x32xf32>
      %cst_63 = arith.constant 1.000000e+00 : f32
      %68 = vector.broadcast %cst_63 : f32 to vector<8x32xf32>
      %69 = arith.addf %68, %67 : vector<8x32xf32>
      %70 = arith.divf %68, %69 : vector<8x32xf32>
      %71 = arith.mulf %62, %44 : vector<8x32xf32>
      %72 = arith.mulf %56, %64 : vector<8x32xf32>
      %73 = arith.addf %71, %72 : vector<8x32xf32>
      %74 = math.tanh %73 : vector<8x32xf32>
      %75 = arith.mulf %70, %74 : vector<8x32xf32>
      %c0_64 = arith.constant 0 : index
      %c0_65 = arith.constant 0 : index
      %76 = vector.load %arg12[%c0_64, %c0_65] : memref<8x32xf32, #tpu.memory_space<vmem>>, vector<8x32xf32>
      tpu.vector_store %arg12[%c0_64, %c0_65], %75 {strides = array<i32>} : memref<8x32xf32, #tpu.memory_space<vmem>>, vector<8x32xf32>,
      %c0_66 = arith.constant 0 : index
      %c0_67 = arith.constant 0 : index
      %77 = vector.load %arg13[%c0_66, %c0_67] : memref<8x32xf32, #tpu.memory_space<vmem>>, vector<8x32xf32>
      tpu.vector_store %arg13[%c0_66, %c0_67], %73 {strides = array<i32>} : memref<8x32xf32, #tpu.memory_space<vmem>>, vector<8x32xf32>,
    }
    %c8_i32_42 = arith.constant 8 : i32
    %c0_43 = arith.constant 0 : index
    %c0_44 = arith.constant 0 : index
    %33 = vector.load %arg12[%c0_43, %c0_44] : memref<8x32xf32, #tpu.memory_space<vmem>>, vector<8x32xf32>
    %c1 = arith.constant 1 : index
    %c0_45 = arith.constant 0 : index
    %c0_46 = arith.constant 0 : index
    %34 = vector.load %arg7[%c1, %c0_45, %c0_46] : memref<2x8x32xf32, #tpu.memory_space<vmem>>, vector<1x8x32xf32>
    %35 = vector.shape_cast %34 : vector<1x8x32xf32> to vector<8x32xf32>
    %36 = vector.shape_cast %33 : vector<8x32xf32> to vector<1x8x32xf32>
    tpu.vector_store %arg7[%c1, %c0_45, %c0_46], %36 {strides = array<i32>} : memref<2x8x32xf32, #tpu.memory_space<vmem>>, vector<1x8x32xf32>,
    %c0_47 = arith.constant 0 : index
    %c0_48 = arith.constant 0 : index
    %37 = vector.load %arg13[%c0_47, %c0_48] : memref<8x32xf32, #tpu.memory_space<vmem>>, vector<8x32xf32>
    %c1_49 = arith.constant 1 : index
    %c0_50 = arith.constant 0 : index
    %c0_51 = arith.constant 0 : index
    %38 = vector.load %arg8[%c1_49, %c0_50, %c0_51] : memref<2x8x32xf32, #tpu.memory_space<vmem>>, vector<1x8x32xf32>
    %39 = vector.shape_cast %38 : vector<1x8x32xf32> to vector<8x32xf32>
    %40 = vector.shape_cast %37 : vector<8x32xf32> to vector<1x8x32xf32>
    tpu.vector_store %arg8[%c1_49, %c0_50, %c0_51], %40 {strides = array<i32>} : memref<2x8x32xf32, #tpu.memory_space<vmem>>, vector<1x8x32xf32>,
    return
  }
}

</mosaic_0001>

<llo_original>
// kernel: encoder_forward.1
$region0: #{encoder_forward.1}
  #allocation0 [shape = 'u32[]', space=smem, size = 0x4, offset = 0x4, fixed_abs, tag = 'smem constant byte address 0x4 - core index']
  #allocation1 [shape = 'u32[72,128]{1,0:T(1,128)}', space=vmem, size = 0x9000, scoped, tag = 'internal scratch']
  #allocation2 [shape = 'f32[64,128]{1,0:T(8,128)}', space=vmem, size = 0x8000, scoped, tag = 'scratch operand']
  #allocation3 [shape = 'f32[64,32]{1,0:T(8,128)}', space=vmem, size = 0x8000, scoped, tag = 'scratch operand']
  #allocation4 [shape = 'f32[64,32]{1,0:T(8,128)}', space=vmem, size = 0x8000, scoped, tag = 'scratch operand']
  #allocation5 [shape = 'f32[8,32]{1,0:T(8,128)}', space=vmem, size = 0x1000, scoped, tag = 'scratch operand']
  #allocation6 [shape = 'f32[8,32]{1,0:T(8,128)}', space=vmem, size = 0x1000, scoped, tag = 'scratch operand']
  %s0 = inlined_call_operand.vmem [shape: bf16[64,32], index: 0, kind: input, shape index: {}]
  %s1 = inlined_call_operand.vmem [shape: bf16[32,128], index: 1, kind: input, shape index: {}]
  %s2 = inlined_call_operand.vmem [shape: bf16[32,128], index: 2, kind: input, shape index: {}]
  %s3 = inlined_call_operand.vmem [shape: f32[1,128], index: 3, kind: input, shape index: {}]
  %s4 = inlined_call_operand.vmem [shape: bf16[32,128], index: 4, kind: input, shape index: {}]
  %s5 = inlined_call_operand.vmem [shape: bf16[32,128], index: 5, kind: input, shape index: {}]
  %s6 = inlined_call_operand.vmem [shape: f32[1,128], index: 6, kind: input, shape index: {}]
  %s7 = inlined_call_operand.vmem [shape: f32[2,8,32], index: 7, kind: output, shape index: {0}]
  %s8 = inlined_call_operand.vmem [shape: f32[2,8,32], index: 8, kind: output, shape index: {1}]
  %9 = xla_tuple %s7, %s8
  %s10 = sld [smem:[#allocation0]]
  $region60: #{encoder_forward.1} parent=0
    _
  %s12 = ssub.s32 1, %s10
  %s13 = scalar_select 0, %s12, %s10
  // Predicated region
  $region2: #{encoder_forward.1} parent=0 // pred_check
    _
  $region3: #{encoder_forward.1} parent=0 // pred_check_branch
    %15 = sbr.rel (0) target = $region5
  $region4: #{encoder_forward.1} parent=0 // pred_region
    _
  $region5: #{encoder_forward.1} parent=0 // pred_fallthru
    _
  // Predicated region
  $region6: #{encoder_forward.1} parent=0 // pred_check
    _
  $region7: #{encoder_forward.1} parent=0 // pred_check_branch
    %17 = sbr.rel (0) target = $region9
  $region8: #{encoder_forward.1} parent=0 // pred_region
    _
  $region9: #{encoder_forward.1} parent=0 // pred_fallthru
    _
  // Predicated region
  $region10: #{encoder_forward.1} parent=0 // pred_check
    _
  $region11: #{encoder_forward.1} parent=0 // pred_check_branch
    %19 = sbr.rel (0) target = $region13
  $region12: #{encoder_forward.1} parent=0 // pred_region
    _
  $region13: #{encoder_forward.1} parent=0 // pred_fallthru
    _
  // Predicated region
  $region14: #{encoder_forward.1} parent=0 // pred_check
    _
  $region15: #{encoder_forward.1} parent=0 // pred_check_branch
    %21 = sbr.rel (0) target = $region17
  $region16: #{encoder_forward.1} parent=0 // pred_region
    _
  $region17: #{encoder_forward.1} parent=0 // pred_fallthru
    _
  // Predicated region
  $region18: #{encoder_forward.1} parent=0 // pred_check
    _
  $region19: #{encoder_forward.1} parent=0 // pred_check_branch
    %23 = sbr.rel (0) target = $region21
  $region20: #{encoder_forward.1} parent=0 // pred_region
    _
  $region21: #{encoder_forward.1} parent=0 // pred_fallthru
    _
  // Predicated region
  $region22: #{encoder_forward.1} parent=0 // pred_check
    _
  $region23: #{encoder_forward.1} parent=0 // pred_check_branch
    %25 = sbr.rel (0) target = $region25
  $region24: #{encoder_forward.1} parent=0 // pred_region
    _
  $region25: #{encoder_forward.1} parent=0 // pred_fallthru
    _
  // Predicated region
  $region26: #{encoder_forward.1} parent=0 // pred_check
    _
  $region27: #{encoder_forward.1} parent=0 // pred_check_branch
    %27 = sbr.rel (0) target = $region29
  $region28: #{encoder_forward.1} parent=0 // pred_region
    _
  $region29: #{encoder_forward.1} parent=0 // pred_fallthru
    _
  %v29 = vld [vmem:[%s0] sm:$0xf]
  %v30 = vld [vmem:[%s0 + $0x4] sm:$0xf]
  %v31 = vld [vmem:[%s0 + $0x8] sm:$0xf]
  %v32 = vld [vmem:[%s0 + $0xc] sm:$0xf]
  %v33 = vld [vmem:[%s0 + $0x10] sm:$0xf]
  %v34 = vld [vmem:[%s0 + $0x14] sm:$0xf]
  %v35 = vld [vmem:[%s0 + $0x18] sm:$0xf]
  %v36 = vld [vmem:[%s0 + $0x1c] sm:$0xf]
  %v37 = vld [vmem:[%s1] sm:$0xf]
  %v38 = vld [vmem:[%s1 + $0x4] sm:$0xf]
  %v39 = vld [vmem:[%s1 + $0x8] sm:$0xf]
  %v40 = vld [vmem:[%s1 + $0xc] sm:$0xf]
  %v41 = vld [vmem:[%s3] sm:$0x1]
  %v43 = vperm.slane %v41, 0
  %v53 = vunpack.c.l.b16 %v29
  %v54 = vunpack.c.l.b16 %v30
  %v55 = vunpack.c.l.b16 %v31
  %v56 = vunpack.c.l.b16 %v32
  %v57 = vunpack.c.l.b16 %v33
  %v58 = vunpack.c.l.b16 %v34
  %v59 = vunpack.c.l.b16 %v35
  %v60 = vunpack.c.l.b16 %v36
  %v61 = vpack.c.b16 %v54, %v53
  %v62 = vpack.c.b16 %v56, %v55
  %v63 = vpack.c.b16 %v58, %v57
  %v64 = vpack.c.b16 %v60, %v59
  %v69 = vunpack.c.l.b16 %v37
  %v70 = vunpack.c.l.b16 %v38
  %v71 = vunpack.c.l.b16 %v39
  %v72 = vunpack.c.l.b16 %v40
  %v73 = vpack.c.b16 %v70, %v69
  %v74 = vpack.c.b16 %v72, %v71
  %vm77 = vcmask 261120
  %v79 = vsel %vm77, %v61, 0
  %v82 = vsel %vm77, %v62, 0
  %v85 = vsel %vm77, %v63, 0
  %v88 = vsel %vm77, %v64, 0
  %90 = vmatpush.bf16.msra.mxu0 0
  %91 = vmatpush.bf16.msra.mxu0 0
  %92 = vmatpush.bf16.msra.mxu0 0
  %93 = vmatpush.bf16.msra.mxu0 0
  %94 = vmatpush.bf16.msra.mxu0 0
  %95 = vmatpush.bf16.msra.mxu0 0
  %96 = vmatpush.bf16.msra.mxu0 %v74
  %97 = vmatpush.bf16.msra.mxu0 %v73
  %98 = vmatmul.bf16.gmra.mxu0 %v79
  %v99 = vpop.f32.mrf.mxu0
  %v100 = vadd.f32 %v43, %v99
  %v101 = vpop.f32.mrf.mxu0
  %v102 = vadd.f32 %v43, %v101
  %103 = vmatmul.bf16.gmra.mxu0 %v82
  %v104 = vpop.f32.mrf.mxu0
  %v105 = vadd.f32 %v43, %v104
  %v106 = vpop.f32.mrf.mxu0
  %v107 = vadd.f32 %v43, %v106
  %108 = vmatmul.bf16.gmra.mxu0 %v85
  %v109 = vpop.f32.mrf.mxu0
  %v110 = vadd.f32 %v43, %v109
  %v111 = vpop.f32.mrf.mxu0
  %v112 = vadd.f32 %v43, %v111
  %113 = vmatmul.bf16.gmra.mxu0 %v88
  %v114 = vpop.f32.mrf.mxu0
  %v115 = vadd.f32 %v43, %v114
  %v116 = vpop.f32.mrf.mxu0
  %v117 = vadd.f32 %v43, %v116
  %118 = vdwg.mxu0
  %119 = vst [vmem:[#allocation2] sm:$0xff] %v100
  %120 = vst [vmem:[#allocation2 + $0x8] sm:$0xff] %v102
  %121 = vst [vmem:[#allocation2 + $0x10] sm:$0xff] %v105
  %122 = vst [vmem:[#allocation2 + $0x18] sm:$0xff] %v107
  %123 = vst [vmem:[#allocation2 + $0x20] sm:$0xff] %v110
  %124 = vst [vmem:[#allocation2 + $0x28] sm:$0xff] %v112
  %125 = vst [vmem:[#allocation2 + $0x30] sm:$0xff] %v115
  %126 = vst [vmem:[#allocation2 + $0x38] sm:$0xff] %v117
  %127 = vst.msk [vmem:[#allocation5] sm:$0xff] %vm77, 0.0
  %128 = vst.msk [vmem:[#allocation6] sm:$0xff] %vm77, 0.0
  loop: start=0, step=1, limit=8
  $region30: #{encoder_forward.1} parent=0 // loop_pre_header
    _
  $region31: #{encoder_forward.1} parent=0 // loop_header
    %s130 = sphi 0, %s134
    %p131 = scmp.ge.s32.totalorder %s130, 8
  $region32: #{encoder_forward.1} parent=0 // loop_header_branch
    %133 = sbr.rel (%p131) target = $region36
  $region33: #{encoder_forward.1} parent=0 // loop_body
    %s135 = smul.u32 %s130, 8
    %v136 = vld [vmem:[#allocation5] sm:$0xff]
    %v137 = vld [vmem:[#allocation6] sm:$0xff]
    %s138 = scalar_lea.vmem [#allocation2], %s135
    %v139 = vld [vmem:[%s138] sm:$0xff]
    %v140 = vpack.c.bf16 %v136, %v136
    %v141 = vld [vmem:[%s2] sm:$0xf]
    %v142 = vld [vmem:[%s2 + $0x4] sm:$0xf]
    %v143 = vld [vmem:[%s2 + $0x8] sm:$0xf]
    %v144 = vld [vmem:[%s2 + $0xc] sm:$0xf]
    %v149 = vunpack.c.l.b16 %v141
    %v150 = vunpack.c.l.b16 %v142
    %v151 = vunpack.c.l.b16 %v143
    %v152 = vunpack.c.l.b16 %v144
    %v153 = vpack.c.b16 %v150, %v149
    %v154 = vpack.c.b16 %v152, %v151
    %v158 = vsel %vm77, %v140, 0
    %160 = vmatpush.bf16.msra.mxu0 0
    %161 = vmatpush.bf16.msra.mxu0 0
    %162 = vmatpush.bf16.msra.mxu0 0
    %163 = vmatpush.bf16.msra.mxu0 0
    %164 = vmatpush.bf16.msra.mxu0 0
    %165 = vmatpush.bf16.msra.mxu0 0
    %166 = vmatpush.bf16.msra.mxu0 %v154
    %167 = vmatpush.bf16.msra.mxu0 %v153
    %168 = vmatmul.bf16.gmra.mxu0 %v158
    %v169 = vpop.f32.mrf.mxu0
    %v170 = vadd.f32 0.0, %v169
    %v171 = vpop.f32.mrf.mxu0
    %172 = vdwg.mxu0
    %v173 = vadd.f32 %v139, %v170
    %v174 = vxor.u32 %v173, 2147483648
    %v175 = vmul.f32 %v174, 1.442695
    %v176 = vpow.pop %v175
    %v177 = vadd.f32 %v176, 1.0
    %v178 = vrcp.pop %v177
    %v179 = vmul.f32 %v177, %v178
    %v180 = vsub.f32 1.0, %v179
    %v181 = vmul.f32 %v178, %v180
    %v182 = vadd.f32 %v178, %v181
    %vm183 = vweird.f32 %v177
    %vm184 = vweird.f32 %v178
    %vm185 = vmor %vm183, %vm184
    %v186 = vsel %vm185, %v178, %v182
    %v187 = vand.u32 2147483647, %v177
    %vm188 = vcmp.eq.f32.partialorder %v187, 8.507059e+37
    %v189 = vand.u32 %v177, 2147483648
    %v190 = vor.u32 1.1754944e-38, %v189
    %v191 = vsel %vm188, %v190, %v186
    %v192 = vmul.f32 1.0, %v191
    %v193 = vtanh.pop %v173
    %195 = vrot.lane.b32.xlu0 %v137, 32
    %v196 = vpop.permute.xlu0 %195
    %v198 = vmul.f32 %v192, %v196
    %200 = vrot.lane.b32.xlu0 %v193, 64
    %v201 = vpop.permute.xlu0 %200
    %v203 = vmul.f32 %v192, %v201
    %205 = vrot.lane.b32.xlu0 %v203, 32
    %v206 = vpop.permute.xlu0 %205
    %v208 = vadd.f32 %v198, %v206
    %v209 = vtanh.pop %v208
    %211 = vrot.lane.b32.xlu0 %v209, 64
    %v212 = vpop.permute.xlu0 %211
    %v214 = vmul.f32 %v192, %v212
    %216 = vrot.lane.b32.xlu0 %v214, 32
    %v217 = vpop.permute.xlu0 %216
    %219 = vst.msk [vmem:[#allocation5] sm:$0xff] %vm77, %v217
    %221 = vrot.lane.b32.xlu0 %v208, 96
    %v222 = vpop.permute.xlu0 %221
    %224 = vst.msk [vmem:[#allocation6] sm:$0xff] %vm77, %v222
    %s225 = scalar_lea.vmem [#allocation3], %s135
    %226 = vst.msk [vmem:[%s225] sm:$0xff] %vm77, %v217
  $region34: #{encoder_forward.1} parent=0 // loop_footer
    %s134 = sadd.s32 1, %s130
  $region35: #{encoder_forward.1} parent=0 // loop_footer_branch
    %129 = sbr.rel target = $region31
  $region36: #{encoder_forward.1} parent=0 // loop_exit
    _
  %v227 = vld [vmem:[#allocation5] sm:$0xff]
  %228 = vst.msk [vmem:[%s7] sm:$0xff] %vm77, %v227
  %v229 = vld [vmem:[#allocation6] sm:$0xff]
  %230 = vst.msk [vmem:[%s8] sm:$0xff] %vm77, %v229
  %v231 = vld [vmem:[#allocation3] sm:$0xff]
  %v232 = vld [vmem:[#allocation3 + $0x8] sm:$0xff]
  %v233 = vld [vmem:[#allocation3 + $0x10] sm:$0xff]
  %v234 = vld [vmem:[#allocation3 + $0x18] sm:$0xff]
  %v235 = vld [vmem:[#allocation3 + $0x20] sm:$0xff]
  %v236 = vld [vmem:[#allocation3 + $0x28] sm:$0xff]
  %v237 = vld [vmem:[#allocation3 + $0x30] sm:$0xff]
  %v238 = vld [vmem:[#allocation3 + $0x38] sm:$0xff]
  %v239 = vpack.c.bf16 %v232, %v231
  %v240 = vpack.c.bf16 %v234, %v233
  %v241 = vpack.c.bf16 %v236, %v235
  %v242 = vpack.c.bf16 %v238, %v237
  %v243 = vld [vmem:[%s4] sm:$0xf]
  %v244 = vld [vmem:[%s4 + $0x4] sm:$0xf]
  %v245 = vld [vmem:[%s4 + $0x8] sm:$0xf]
  %v246 = vld [vmem:[%s4 + $0xc] sm:$0xf]
  %v247 = vld [vmem:[%s6] sm:$0x1]
  %v249 = vperm.slane %v247, 0
  %v255 = vunpack.c.l.b16 %v243
  %v256 = vunpack.c.l.b16 %v244
  %v257 = vunpack.c.l.b16 %v245
  %v258 = vunpack.c.l.b16 %v246
  %v259 = vpack.c.b16 %v256, %v255
  %v260 = vpack.c.b16 %v258, %v257
  %v264 = vsel %vm77, %v239, 0
  %v267 = vsel %vm77, %v240, 0
  %v270 = vsel %vm77, %v241, 0
  %v273 = vsel %vm77, %v242, 0
  %275 = vmatpush.bf16.msra.mxu0 0
  %276 = vmatpush.bf16.msra.mxu0 0
  %277 = vmatpush.bf16.msra.mxu0 0
  %278 = vmatpush.bf16.msra.mxu0 0
  %279 = vmatpush.bf16.msra.mxu0 0
  %280 = vmatpush.bf16.msra.mxu0 0
  %281 = vmatpush.bf16.msra.mxu0 %v260
  %282 = vmatpush.bf16.msra.mxu0 %v259
  %283 = vmatmul.bf16.gmra.mxu0 %v264
  %v284 = vpop.f32.mrf.mxu0
  %v285 = vadd.f32 %v249, %v284
  %v286 = vpop.f32.mrf.mxu0
  %v287 = vadd.f32 %v249, %v286
  %288 = vmatmul.bf16.gmra.mxu0 %v267
  %v289 = vpop.f32.mrf.mxu0
  %v290 = vadd.f32 %v249, %v289
  %v291 = vpop.f32.mrf.mxu0
  %v292 = vadd.f32 %v249, %v291
  %293 = vmatmul.bf16.gmra.mxu0 %v270
  %v294 = vpop.f32.mrf.mxu0
  %v295 = vadd.f32 %v249, %v294
  %v296 = vpop.f32.mrf.mxu0
  %v297 = vadd.f32 %v249, %v296
  %298 = vmatmul.bf16.gmra.mxu0 %v273
  %v299 = vpop.f32.mrf.mxu0
  %v300 = vadd.f32 %v249, %v299
  %v301 = vpop.f32.mrf.mxu0
  %v302 = vadd.f32 %v249, %v301
  %303 = vdwg.mxu0
  %304 = vst [vmem:[#allocation2] sm:$0xff] %v285
  %305 = vst [vmem:[#allocation2 + $0x8] sm:$0xff] %v287
  %306 = vst [vmem:[#allocation2 + $0x10] sm:$0xff] %v290
  %307 = vst [vmem:[#allocation2 + $0x18] sm:$0xff] %v292
  %308 = vst [vmem:[#allocation2 + $0x20] sm:$0xff] %v295
  %309 = vst [vmem:[#allocation2 + $0x28] sm:$0xff] %v297
  %310 = vst [vmem:[#allocation2 + $0x30] sm:$0xff] %v300
  %311 = vst [vmem:[#allocation2 + $0x38] sm:$0xff] %v302
  %312 = vst.msk [vmem:[#allocation5] sm:$0xff] %vm77, 0.0
  %313 = vst.msk [vmem:[#allocation6] sm:$0xff] %vm77, 0.0
  loop: start=0, step=1, limit=8
  $region37: #{encoder_forward.1} parent=0 // loop_pre_header
    _
  $region38: #{encoder_forward.1} parent=0 // loop_header
    %s315 = sphi 0, %s319
    %p316 = scmp.ge.s32.totalorder %s315, 8
  $region39: #{encoder_forward.1} parent=0 // loop_header_branch
    %318 = sbr.rel (%p316) target = $region43
  $region40: #{encoder_forward.1} parent=0 // loop_body
    %s320 = smul.u32 %s315, 8
    %v321 = vld [vmem:[#allocation5] sm:$0xff]
    %v322 = vld [vmem:[#allocation6] sm:$0xff]
    %s323 = scalar_lea.vmem [#allocation2], %s320
    %v324 = vld [vmem:[%s323] sm:$0xff]
    %v325 = vpack.c.bf16 %v321, %v321
    %v326 = vld [vmem:[%s5] sm:$0xf]
    %v327 = vld [vmem:[%s5 + $0x4] sm:$0xf]
    %v328 = vld [vmem:[%s5 + $0x8] sm:$0xf]
    %v329 = vld [vmem:[%s5 + $0xc] sm:$0xf]
    %v334 = vunpack.c.l.b16 %v326
    %v335 = vunpack.c.l.b16 %v327
    %v336 = vunpack.c.l.b16 %v328
    %v337 = vunpack.c.l.b16 %v329
    %v338 = vpack.c.b16 %v335, %v334
    %v339 = vpack.c.b16 %v337, %v336
    %v343 = vsel %vm77, %v325, 0
    %345 = vmatpush.bf16.msra.mxu0 0
    %346 = vmatpush.bf16.msra.mxu0 0
    %347 = vmatpush.bf16.msra.mxu0 0
    %348 = vmatpush.bf16.msra.mxu0 0
    %349 = vmatpush.bf16.msra.mxu0 0
    %350 = vmatpush.bf16.msra.mxu0 0
    %351 = vmatpush.bf16.msra.mxu0 %v339
    %352 = vmatpush.bf16.msra.mxu0 %v338
    %353 = vmatmul.bf16.gmra.mxu0 %v343
    %v354 = vpop.f32.mrf.mxu0
    %v355 = vadd.f32 0.0, %v354
    %v356 = vpop.f32.mrf.mxu0
    %357 = vdwg.mxu0
    %v358 = vadd.f32 %v324, %v355
    %v359 = vxor.u32 %v358, 2147483648
    %v360 = vmul.f32 %v359, 1.442695
    %v361 = vpow.pop %v360
    %v362 = vadd.f32 %v361, 1.0
    %v363 = vrcp.pop %v362
    %v364 = vmul.f32 %v362, %v363
    %v365 = vsub.f32 1.0, %v364
    %v366 = vmul.f32 %v363, %v365
    %v367 = vadd.f32 %v363, %v366
    %vm368 = vweird.f32 %v362
    %vm369 = vweird.f32 %v363
    %vm370 = vmor %vm368, %vm369
    %v371 = vsel %vm370, %v363, %v367
    %v372 = vand.u32 2147483647, %v362
    %vm373 = vcmp.eq.f32.partialorder %v372, 8.507059e+37
    %v374 = vand.u32 %v362, 2147483648
    %v375 = vor.u32 1.1754944e-38, %v374
    %v376 = vsel %vm373, %v375, %v371
    %v377 = vmul.f32 1.0, %v376
    %v378 = vtanh.pop %v358
    %380 = vrot.lane.b32.xlu0 %v322, 32
    %v381 = vpop.permute.xlu0 %380
    %v383 = vmul.f32 %v377, %v381
    %385 = vrot.lane.b32.xlu0 %v378, 64
    %v386 = vpop.permute.xlu0 %385
    %v388 = vmul.f32 %v377, %v386
    %390 = vrot.lane.b32.xlu0 %v388, 32
    %v391 = vpop.permute.xlu0 %390
    %v393 = vadd.f32 %v383, %v391
    %v394 = vtanh.pop %v393
    %396 = vrot.lane.b32.xlu0 %v394, 64
    %v397 = vpop.permute.xlu0 %396
    %v399 = vmul.f32 %v377, %v397
    %401 = vrot.lane.b32.xlu0 %v399, 32
    %v402 = vpop.permute.xlu0 %401
    %404 = vst.msk [vmem:[#allocation5] sm:$0xff] %vm77, %v402
    %406 = vrot.lane.b32.xlu0 %v393, 96
    %v407 = vpop.permute.xlu0 %406
    %409 = vst.msk [vmem:[#allocation6] sm:$0xff] %vm77, %v407
  $region41: #{encoder_forward.1} parent=0 // loop_footer
    %s319 = sadd.s32 1, %s315
  $region42: #{encoder_forward.1} parent=0 // loop_footer_branch
    %314 = sbr.rel target = $region38
  $region43: #{encoder_forward.1} parent=0 // loop_exit
    _
  %v410 = vld [vmem:[#allocation5] sm:$0xff]
  %s411 = scalar_lea.vmem %s7, 8
  %412 = vst.msk [vmem:[%s411] sm:$0xff] %vm77, %v410
  %v413 = vld [vmem:[#allocation6] sm:$0xff]
  %s414 = scalar_lea.vmem %s8, 8
  %415 = vst.msk [vmem:[%s414] sm:$0xff] %vm77, %v413
  // Predicated region
  $region44: #{encoder_forward.1} parent=0 // pred_check
    _
  $region45: #{encoder_forward.1} parent=0 // pred_check_branch
    %417 = sbr.rel (0) target = $region47
  $region46: #{encoder_forward.1} parent=0 // pred_region
    _
  $region47: #{encoder_forward.1} parent=0 // pred_fallthru
    _
  // Predicated region
  $region48: #{encoder_forward.1} parent=0 // pred_check
    _
  $region49: #{encoder_forward.1} parent=0 // pred_check_branch
    %419 = sbr.rel (0) target = $region51
  $region50: #{encoder_forward.1} parent=0 // pred_region
    _
  $region51: #{encoder_forward.1} parent=0 // pred_fallthru
    _
  // Predicated region
  $region52: #{encoder_forward.1} parent=0 // pred_check
    _
  $region53: #{encoder_forward.1} parent=0 // pred_check_branch
    %421 = sbr.rel (0) target = $region55
  $region54: #{encoder_forward.1} parent=0 // pred_region
    _
  $region55: #{encoder_forward.1} parent=0 // pred_fallthru
    _
  // Predicated region
  $region56: #{encoder_forward.1} parent=0 // pred_check
    _
  $region57: #{encoder_forward.1} parent=0 // pred_check_branch
    %423 = sbr.rel (0) target = $region59
  $region58: #{encoder_forward.1} parent=0 // pred_region
    _
  $region59: #{encoder_forward.1} parent=0 // pred_fallthru
    _

</llo_original>
